<compile_context>
chip_gen: v7x
topology: tpu7x:2x2x1
jax: 0.10.0
libtpu: 0.0.40
codegen_flags: <defaults>
</compile_context>

<pallas_src>
import jax
import jax.numpy as jnp
from jax import lax
from jax.experimental import pallas as pl
from jax.experimental.pallas import tpu as pltpu

NEG_SLOPE = 0.01       # torch.nn.LeakyReLU default
BN_EPS = 1e-5          # torch.nn.BatchNorm1d default
HIDDEN = 32
LANE = 128
MATMUL_DTYPE = jnp.bfloat16   # single-pass MXU inputs; jnp.float32 for full-f32 matmuls


def _round_up(x, m):
    return (x + m - 1) // m * m


def _leaky_relu(x):
    return jnp.where(x > 0, x, NEG_SLOPE * x)


def _mm(a, b):
    """Matmul with pinned operand dtype + f32 accumulation (identical in kernel & reference)."""
    return jnp.dot(a.astype(MATMUL_DTYPE), b.astype(MATMUL_DTYPE),
                   preferred_element_type=jnp.float32)


def _pick_vmem_limit():
    """Generation-aware scoped-VMEM limit (<=48 MiB on v7x, 64 MiB on v5e/v6e)."""
    try:
        cap = int(pltpu.get_tpu_info().vmem_capacity_bytes)
        return int(min(cap * 3 // 4, 64 * 1024 * 1024))
    except Exception:
        return 32 * 1024 * 1024


# --------------------------------------------------------------------------------------
# Kernel 1: per-tile partial sums of h2 and h2^2 (feed BatchNorm2 batch statistics).
# --------------------------------------------------------------------------------------
def make_stats_kernel(n_valid, tile):
    n_sub = tile // LANE

    def kernel(x_ref, p_ref, w2_ref, part_ref):
        j = pl.program_id(0)
        a1 = p_ref[:, 0:1]          # folded Linear1+BN1 scale   (32, 1)
        b1 = p_ref[:, 1:2]          # folded Linear1+BN1 shift   (32, 1)
        b2 = p_ref[:, 2:3]          # Linear2 bias               (32, 1)

        x = x_ref[...]                                        # (1, tile)
        act = _leaky_relu(a1 * x + b1)                        # (32, tile)  VPU outer-product FMA
        h2 = _mm(w2_ref[...], act) + b2                       # (32, tile)  MXU

        # Padded batch lanes must not pollute the BN statistics (x is zero-padded -> finite).
        lane = lax.broadcasted_iota(jnp.int32, (1, tile), 1) + j * tile
        mask = (lane < n_valid).astype(jnp.float32)           # (1, tile)

        # Lane-parallel accumulation: pure VPU adds over 128-lane sub-blocks; the final
        # cross-lane reduction happens once, in the wrapper, on a tiny array.
        s = jnp.zeros((HIDDEN, LANE), jnp.float32)
        q = jnp.zeros((HIDDEN, LANE), jnp.float32)
        for c in range(n_sub):
            h_sl = h2[:, c * LANE:(c + 1) * LANE]
            m_sl = mask[:, c * LANE:(c + 1) * LANE]
            hm = h_sl * m_sl
            s = s + hm
            q = q + hm * h_sl
        part_ref[0, 0:HIDDEN, :] = s
        part_ref[0, HIDDEN:2 * HIDDEN, :] = q

    return kernel


# --------------------------------------------------------------------------------------
# Kernel 2: apply folded BN1/BN2 + Vl head; store batch-major blocks (no XLA epilogue).
# --------------------------------------------------------------------------------------
def make_apply_kernel(class_num, tile):
    C = class_num

    def kernel(x_ref, p_ref, w2_ref, wv_ref, v_ref, enc_ref):
        a1 = p_ref[:, 0:1]
        b1 = p_ref[:, 1:2]
        b2 = p_ref[:, 2:3]
        sc2 = p_ref[:, 3:4]         # folded BN2 scale
        sh2 = p_ref[:, 4:5]         # folded BN2 shift
        bv = p_ref[0:C, 5:6]        # Vl bias (padded into the HIDDEN-row slab)

        x = x_ref[...]                                        # (1, tile)
        act = _leaky_relu(a1 * x + b1)                        # (32, tile)
        h2 = _mm(w2_ref[...], act) + b2                       # (32, tile)
        enc = h2 * sc2 + sh2                                  # (32, tile)  BatchNorm2 output

        # Vl head, computed feature-major (full-lane VPU/EUP; class axis on sublanes).
        z = _mm(wv_ref[...], _leaky_relu(enc)) + bv           # (C, tile)
        zmax = jnp.max(z, axis=0, keepdims=True)
        zs = z - zmax
        lse = jnp.log(jnp.sum(jnp.exp(zs), axis=0, keepdims=True))
        v = zs - lse                                          # (C, tile)  log-probs

        # Batch-major stores via the (otherwise idle) XLU transpose -> outputs land in HBM in
        # the PyTorch (N, feature) convention with no wrapper-side re-read/re-write.
        enc_ref[...] = jnp.transpose(enc)                     # (tile, 32)
        v_ref[...] = jnp.transpose(v)                         # (tile, C)

    return kernel


# --------------------------------------------------------------------------------------
# Parameters (torch-native shapes: Linear weight = (out_features, in_features)).
# --------------------------------------------------------------------------------------
def init_ilnet_params(key, class_num):
    ks = jax.random.split(key, 6)

    def linear(kw, kb, fan_in, fan_out):
        bound = 1.0 / jnp.sqrt(float(fan_in))
        w = jax.random.uniform(kw, (fan_out, fan_in), jnp.float32, -bound, bound)
        b = jax.random.uniform(kb, (fan_out,), jnp.float32, -bound, bound)
        return w, b

    w1, b1 = linear(ks[0], ks[1], 1, HIDDEN)
    w2, b2 = linear(ks[2], ks[3], HIDDEN, HIDDEN)
    wv, bv = linear(ks[4], ks[5], HIDDEN, class_num)
    return dict(w1=w1, b1=b1, g1=jnp.ones((HIDDEN,), jnp.float32),
                be1=jnp.zeros((HIDDEN,), jnp.float32),
                w2=w2, b2=b2, g2=jnp.ones((HIDDEN,), jnp.float32),
                be2=jnp.zeros((HIDDEN,), jnp.float32),
                wv=wv, bv=bv)


# --------------------------------------------------------------------------------------
# Forward pass wrapper.
# --------------------------------------------------------------------------------------
def ilnet_forward(x, params, class_num, tile_n=8192):
    """ILNet forward (in_channel_num == 0). Returns (v, encoding) in PyTorch layout."""
    C = int(class_num)
    assert 1 <= C <= HIDDEN, "packed-param slab assumes class_num <= 32"

    xf = x.reshape(-1).astype(jnp.float32)            # torch: x.reshape(-1, 1)
    n = int(xf.shape[0])

    n128 = _round_up(n, LANE)
    tile = _round_up(min(int(tile_n), n128), LANE)    # lane-dense batch tiles
    n_pad = _round_up(n128, tile)
    num_tiles = n_pad // tile

    x_row = jnp.pad(xf, (0, n_pad - n)).reshape(1, n_pad)

    w1 = params["w1"].reshape(HIDDEN)
    b2 = params["b2"]

    # BN1 folded analytically (exact, cancellation-free): Linear1+BN1 == A1*x + B1 per feature.
    mean_x = jnp.mean(xf)
    var_x = jnp.var(xf)                               # biased, matches train-mode BatchNorm
    s1 = params["g1"] * lax.rsqrt(w1 * w1 * var_x + BN_EPS)
    a1 = w1 * s1
    b1f = params["be1"] - a1 * mean_x                 # (b1 cancels exactly in train-mode BN)

    vmem_limit = _pick_vmem_limit()
    cparams = pltpu.CompilerParams(dimension_semantics=("parallel",),
                                   vmem_limit_bytes=vmem_limit)

    # --- pass 1: BN2 batch statistics (exact, via per-tile lane-parallel partial sums) ----
    stats_slab = jnp.stack([a1, b1f, b2], axis=1)                     # (32, 3), one small DMA

    stats_cost = pl.CostEstimate(
        flops=int(n_pad * (2 * HIDDEN * HIDDEN + 10 * HIDDEN)),
        transcendentals=0,
        bytes_accessed=int(4 * (n_pad + num_tiles * 2 * HIDDEN * LANE
                                + HIDDEN * (HIDDEN + 3))))

    partials = pl.pallas_call(
        make_stats_kernel(n, tile),
        out_shape=jax.ShapeDtypeStruct((num_tiles, 2 * HIDDEN, LANE), jnp.float32),
        grid=(num_tiles,),
        in_specs=[
            pl.BlockSpec((1, tile), lambda j: (0, j)),                # x
            pl.BlockSpec((HIDDEN, 3), lambda j: (0, 0)),              # packed per-feature params
            pl.BlockSpec((HIDDEN, HIDDEN), lambda j: (0, 0)),         # W2 (out, in)
        ],
        out_specs=pl.BlockSpec((1, 2 * HIDDEN, LANE), lambda j: (j, 0, 0)),
        compiler_params=cparams,
        cost_estimate=stats_cost,
    )(x_row, stats_slab, params["w2"])

    sums = jnp.sum(partials, axis=(0, 2))                             # (64,) tiny XLA reduce
    inv_n = 1.0 / float(n)
    mean2 = sums[:HIDDEN] * inv_n
    var2 = jnp.maximum(sums[HIDDEN:] * inv_n - mean2 * mean2, 0.0)    # biased variance
    sc2 = params["g2"] * lax.rsqrt(var2 + BN_EPS)
    sh2 = params["be2"] - mean2 * sc2

    # --- pass 2: apply + Vl head, batch-major outputs --------------------------------------
    bv_pad = jnp.zeros((HIDDEN,), jnp.float32).at[:C].set(params["bv"])
    apply_slab = jnp.stack([a1, b1f, b2, sc2, sh2, bv_pad], axis=1)   # (32, 6)

    apply_cost = pl.CostEstimate(
        flops=int(n_pad * (2 * HIDDEN * HIDDEN + 2 * HIDDEN * C + 16 * HIDDEN + 8 * C)),
        transcendentals=int(n_pad * (C + 1)),
        bytes_accessed=int(4 * (n_pad + n * (HIDDEN + C)
                                + HIDDEN * (HIDDEN + 6) + C * HIDDEN)))

    # Output arrays are exactly n rows: the ragged last block (if any) is clipped by Pallas,
    # so no wrapper-side slice / transpose re-touches the outputs in HBM.
    v, enc = pl.pallas_call(
        make_apply_kernel(C, tile),
        out_shape=(jax.ShapeDtypeStruct((n, C), jnp.float32),
                   jax.ShapeDtypeStruct((n, HIDDEN), jnp.float32)),
        grid=(num_tiles,),
        in_specs=[
            pl.BlockSpec((1, tile), lambda j: (0, j)),                # x
            pl.BlockSpec((HIDDEN, 6), lambda j: (0, 0)),              # packed per-feature params
            pl.BlockSpec((HIDDEN, HIDDEN), lambda j: (0, 0)),         # W2
            pl.BlockSpec((C, HIDDEN), lambda j: (0, 0)),              # Wv
        ],
        out_specs=(pl.BlockSpec((tile, C), lambda j: (j, 0)),         # v   (batch-major)
                   pl.BlockSpec((tile, HIDDEN), lambda j: (j, 0))),   # enc (batch-major)
        compiler_params=cparams,
        cost_estimate=apply_cost,
    )(x_row, apply_slab, params["w2"], params["wv"])

    return v, enc


# --------------------------------------------------------------------------------------
# Pure-JAX reference (mirrors the kernel's matmul operand dtype so validation is exact).
# --------------------------------------------------------------------------------------
def _bn_ref(h, gamma, beta):
    mean = jnp.mean(h, axis=0, keepdims=True)
    var = jnp.mean((h - mean) * (h - mean), axis=0, keepdims=True)
    return (h - mean) * lax.rsqrt(var + BN_EPS) * gamma + beta


def ilnet_reference(x, params):
    x2d = x.reshape(-1, 1).astype(jnp.float32)
    # Linear(1,32) is rank-1: keep it as an exact f32 broadcast FMA (matches the kernel).
    h = x2d * params["w1"].reshape(1, HIDDEN) + params["b1"]
    h = _bn_ref(h, params["g1"], params["be1"])
    h = _leaky_relu(h)
    h = _mm(h, params["w2"].T) + params["b2"]
    enc = _bn_ref(h, params["g2"], params["be2"])
    z = _mm(_leaky_relu(enc), params["wv"].T) + params["bv"]
    return jax.nn.log_softmax(z, axis=1), enc


if __name__ == "__main__":
    key = jax.random.PRNGKey(0)
    kx1, kx2, kx3, kp = jax.random.split(key, 4)

    class_num = 4
    params = init_ilnet_params(kp, class_num)

    def check(xin, tile_n=8192, tol=1e-3):
        v, enc = ilnet_forward(xin, params, class_num, tile_n=tile_n)
        jax.block_until_ready((v, enc))
        v_ref, enc_ref = ilnet_reference(xin, params)
        nrows = int(xin.size)
        assert v.shape == (nrows, class_num) and enc.shape == (nrows, HIDDEN)
        assert bool(jnp.all(jnp.isfinite(v))) and bool(jnp.all(jnp.isfinite(enc)))
        # Tolerance leaves margin for MXU accumulation-order differences between the compiled
        # Mosaic matmul and XLA's matmul in the reference.
        assert jnp.allclose(v, v_ref, atol=tol, rtol=tol), float(jnp.max(jnp.abs(v - v_ref)))
        assert jnp.allclose(enc, enc_ref, atol=tol, rtol=tol), float(jnp.max(jnp.abs(enc - enc_ref)))

    # N = 8*16 = 128 flattened rows (exactly one 128-lane tile).
    check(jax.random.normal(kx1, (8, 16), jnp.float32))

    # Ragged N = 65: padded lanes are excluded from BN statistics; ragged output rows clipped.
    check(jax.random.normal(kx2, (5, 13), jnp.float32))

    # Multi-tile N = 384 with forced 128-lane tiles: exercises cross-tile BN2 stat accumulation.
    check(jax.random.normal(kx3, (3, 128), jnp.float32), tile_n=128)

    print("KERNEL_OK")
</pallas_src>

<mosaic_0001>
module attributes {stable_mosaic.version = 11 : i64} {
  func.func @kernel(%arg0: i32, %arg1: memref<1x128xf32, #tpu.memory_space<vmem>>, %arg2: memref<32x3xf32, #tpu.memory_space<vmem>>, %arg3: memref<32x32xf32, #tpu.memory_space<vmem>>, %arg4: memref<1x64x128xf32, #tpu.memory_space<vmem>>) attributes {dimension_semantics = [#tpu.dimension_semantics<parallel>], iteration_bounds = array<i64: 1>, scalar_prefetch = 0 : i64, scratch_operands = 0 : i64, tpu.core_type = #tpu.core_type<tc>, window_params = [{transform_indices = @transform_0, window_bounds = array<i64: 1, 128>}, {pipeline_mode = #tpu.pipeline_mode<synchronous>, transform_indices = @transform_1, window_bounds = array<i64: 32, 3>}, {pipeline_mode = #tpu.pipeline_mode<synchronous>, transform_indices = @transform_2, window_bounds = array<i64: 32, 32>}, {transform_indices = @transform_3, window_bounds = array<i64: 1, 64, 128>}]} {
    %c0 = arith.constant 0 : index
    %c0_0 = arith.constant 0 : index
    %0 = vector.load %arg2[%c0, %c0_0] : memref<32x3xf32, #tpu.memory_space<vmem>>, vector<32x1xf32>
    %c0_1 = arith.constant 0 : index
    %c1 = arith.constant 1 : index
    %1 = vector.load %arg2[%c0_1, %c1] : memref<32x3xf32, #tpu.memory_space<vmem>>, vector<32x1xf32>
    %c0_2 = arith.constant 0 : index
    %c2 = arith.constant 2 : index
    %2 = vector.load %arg2[%c0_2, %c2] : memref<32x3xf32, #tpu.memory_space<vmem>>, vector<32x1xf32>
    %c0_3 = arith.constant 0 : index
    %c0_4 = arith.constant 0 : index
    %3 = vector.load %arg1[%c0_3, %c0_4] : memref<1x128xf32, #tpu.memory_space<vmem>>, vector<1x128xf32>
    %4 = vector.broadcast %0 : vector<32x1xf32> to vector<32x128xf32>
    %5 = vector.broadcast %3 : vector<1x128xf32> to vector<32x128xf32>
    %6 = arith.mulf %4, %5 : vector<32x128xf32>
    %7 = vector.broadcast %1 : vector<32x1xf32> to vector<32x128xf32>
    %8 = arith.addf %6, %7 : vector<32x128xf32>
    %cst = arith.constant 0.000000e+00 : f32
    %9 = vector.broadcast %cst : f32 to vector<32x128xf32>
    %10 = arith.cmpf ogt, %8, %9 : vector<32x128xf32>
    %cst_5 = arith.constant 0.00999999977 : f32
    %11 = vector.broadcast %cst_5 : f32 to vector<32x128xf32>
    %12 = arith.mulf %11, %8 : vector<32x128xf32>
    %13 = arith.select %10, %8, %12 : vector<32x128xi1>, vector<32x128xf32>
    %c0_6 = arith.constant 0 : index
    %c0_7 = arith.constant 0 : index
    %14 = vector.load %arg3[%c0_6, %c0_7] : memref<32x32xf32, #tpu.memory_space<vmem>>, vector<32x32xf32>
    %15 = arith.truncf %14 : vector<32x32xf32> to vector<32x32xbf16>
    %16 = arith.truncf %13 : vector<32x128xf32> to vector<32x128xbf16>
    %cst_8 = arith.constant dense<0.000000e+00> : vector<32x128xf32>
    %17 = tpu.matmul %15, %16, %cst_8 {dimension_numbers = #tpu.dot_dimension_numbers<[1], [0], [0], [1], [0, 0, 1, 1], [], []>} : vector<32x32xbf16>, vector<32x128xbf16>, vector<32x128xf32> -> vector<32x128xf32>
    %18 = vector.broadcast %2 : vector<32x1xf32> to vector<32x128xf32>
    %19 = arith.addf %17, %18 : vector<32x128xf32>
    %20 = tpu.iota {dimensions = array<i32: 1>} : vector<1x128xi32>
    %c128_i32 = arith.constant 128 : i32
    %21 = arith.muli %arg0, %c128_i32 : i32
    %22 = vector.broadcast %21 : i32 to vector<1x128xi32>
    %23 = arith.addi %20, %22 : vector<1x128xi32>
    %c128_i32_9 = arith.constant 128 : i32
    %24 = vector.broadcast %c128_i32_9 : i32 to vector<1x128xi32>
    %25 = arith.cmpi slt, %23, %24 : vector<1x128xi32>
    %26 = arith.extui %25 : vector<1x128xi1> to vector<1x128xi32>
    %27 = arith.sitofp %26 : vector<1x128xi32> to vector<1x128xf32>
    %cst_10 = arith.constant 0.000000e+00 : f32
    %28 = vector.broadcast %cst_10 : f32 to vector<32x128xf32>
    %cst_11 = arith.constant 0.000000e+00 : f32
    %29 = vector.broadcast %cst_11 : f32 to vector<32x128xf32>
    %30 = vector.broadcast %27 : vector<1x128xf32> to vector<32x128xf32>
    %31 = arith.mulf %19, %30 : vector<32x128xf32>
    %32 = arith.addf %28, %31 : vector<32x128xf32>
    %33 = arith.mulf %31, %19 : vector<32x128xf32>
    %34 = arith.addf %29, %33 : vector<32x128xf32>
    %c0_12 = arith.constant 0 : index
    %c0_13 = arith.constant 0 : index
    %c0_14 = arith.constant 0 : index
    %35 = vector.load %arg4[%c0_12, %c0_13, %c0_14] : memref<1x64x128xf32, #tpu.memory_space<vmem>>, vector<1x32x128xf32>
    %36 = vector.shape_cast %35 : vector<1x32x128xf32> to vector<32x128xf32>
    %37 = vector.shape_cast %32 : vector<32x128xf32> to vector<1x32x128xf32>
    tpu.vector_store %arg4[%c0_12, %c0_13, %c0_14], %37 {strides = array<i32>} : memref<1x64x128xf32, #tpu.memory_space<vmem>>, vector<1x32x128xf32>,
    %c0_15 = arith.constant 0 : index
    %c32 = arith.constant 32 : index
    %c0_16 = arith.constant 0 : index
    %38 = vector.load %arg4[%c0_15, %c32, %c0_16] : memref<1x64x128xf32, #tpu.memory_space<vmem>>, vector<1x32x128xf32>
    %39 = vector.shape_cast %38 : vector<1x32x128xf32> to vector<32x128xf32>
    %40 = vector.shape_cast %34 : vector<32x128xf32> to vector<1x32x128xf32>
    tpu.vector_store %arg4[%c0_15, %c32, %c0_16], %40 {strides = array<i32>} : memref<1x64x128xf32, #tpu.memory_space<vmem>>, vector<1x32x128xf32>,
    return
  }
  func.func @transform_0(%arg0: i32) -> (i32, i32) {
    %c0_i32 = arith.constant 0 : i32
    %c0_i32_0 = arith.constant 0 : i32
    return %c0_i32, %arg0 : i32, i32
  }
  func.func @transform_1(%arg0: i32) -> (i32, i32) {
    %c0_i32 = arith.constant 0 : i32
    %c0_i32_0 = arith.constant 0 : i32
    %c0_i32_1 = arith.constant 0 : i32
    return %c0_i32, %c0_i32_0 : i32, i32
  }
  func.func @transform_2(%arg0: i32) -> (i32, i32) {
    %c0_i32 = arith.constant 0 : i32
    %c0_i32_0 = arith.constant 0 : i32
    %c0_i32_1 = arith.constant 0 : i32
    return %c0_i32, %c0_i32_0 : i32, i32
  }
  func.func @transform_3(%arg0: i32) -> (i32, i32, i32) {
    %c0_i32 = arith.constant 0 : i32
    %c0_i32_0 = arith.constant 0 : i32
    %c0_i32_1 = arith.constant 0 : i32
    return %arg0, %c0_i32, %c0_i32_0 : i32, i32, i32
  }
}

</mosaic_0001>

<llo_original>
// kernel: tpu_custom_call.1
$region0: #{tpu_custom_call.1}
  #allocation0 [shape = 'u32[]', space=smem, size = 0x4, offset = 0x4, fixed_abs, tag = 'smem constant byte address 0x4 - core index']
  #allocation1 [shape = 'u32[144,128]{1,0:T(1,128)}', space=vmem, size = 0x12000, scoped, tag = 'internal scratch']
  %s0 = inlined_call_operand.vmem [shape: f32[1,128], index: 0, kind: input, shape index: {}]
  %s1 = inlined_call_operand.vmem [shape: f32[32,3], index: 1, kind: input, shape index: {}]
  %s2 = inlined_call_operand.vmem [shape: f32[32,32], index: 2, kind: input, shape index: {}]
  %s3 = inlined_call_operand.hbm [shape: f32[1,64,128], index: 3, kind: output, shape index: {}]
  %s4 = sld [smem:[#allocation0]]
  $region22: #{tpu_custom_call.1} parent=0
    _
  %s6 = ssub.s32 1, %s4
  %s7 = scalar_select 0, %s6, %s4
  $region1: #{tpu_custom_call.1} parent=0
    #allocation2 [shape = 'u8[32768]{0}', space=vmem, size = 0x8000, scoped, tag = 'output window, operand 0, single buffered']
    #allocation3 [shape = 's32[1]{0}', space=sflag, size = 0x4, scoped, tag = 'scoped memory for tpu_custom_call.1']
    %8 = vsyncpa [#allocation3], 0
    // Predicated region
    $region2: #{tpu_custom_call.1} parent=1 // pred_check
      _
    $region3: #{tpu_custom_call.1} parent=1 // pred_check_branch
      %10 = sbr.rel (0) target = $region5
    $region4: #{tpu_custom_call.1} parent=1 // pred_region
      _
    $region5: #{tpu_custom_call.1} parent=1 // pred_fallthru
      _
    // Predicated region
    $region6: #{tpu_custom_call.1} parent=1 // pred_check
      _
    $region7: #{tpu_custom_call.1} parent=1 // pred_check_branch
      %12 = sbr.rel (0) target = $region9
    $region8: #{tpu_custom_call.1} parent=1 // pred_region
      _
    $region9: #{tpu_custom_call.1} parent=1 // pred_fallthru
      _
    // Predicated region
    $region10: #{tpu_custom_call.1} parent=1 // pred_check
      _
    $region11: #{tpu_custom_call.1} parent=1 // pred_check_branch
      %14 = sbr.rel (0) target = $region13
    $region12: #{tpu_custom_call.1} parent=1 // pred_region
      _
    $region13: #{tpu_custom_call.1} parent=1 // pred_fallthru
      _
    %v16 = vld [vmem:[%s1] sm:$0xff]
    %v17 = vld [vmem:[%s1 + $0x8] sm:$0xff]
    %v18 = vld [vmem:[%s1 + $0x10] sm:$0xff]
    %v19 = vld [vmem:[%s1 + $0x18] sm:$0xff]
    %v20 = vld [vmem:[%s0] sm:$0x1]
    %22 = vset.pattern.permute.xlu0 0
    %23 = vperm.xlu0 %22, %v16
    %v24 = vpop.permute.xlu0 %23
    %27 = vset.pattern.permute.xlu0 0
    %28 = vperm.xlu0 %27, %v17
    %v29 = vpop.permute.xlu0 %28
    %32 = vset.pattern.permute.xlu0 0
    %33 = vperm.xlu0 %32, %v18
    %v34 = vpop.permute.xlu0 %33
    %37 = vset.pattern.permute.xlu0 0
    %38 = vperm.xlu0 %37, %v19
    %v39 = vpop.permute.xlu0 %38
    %v42 = vlaneseq
    %v43 = vshrl.u32 %v42, 7
    %v44 = vsub.s32 0, %v43
    %v45 = vrot.slane %v20, %v44
    %v47 = vmul.f32 %v24, %v45
    %v48 = vmul.f32 %v29, %v45
    %v49 = vmul.f32 %v34, %v45
    %v50 = vmul.f32 %v39, %v45
    %51 = vset.pattern.permute.xlu0 1
    %52 = vperm.xlu0 %51, %v16
    %v53 = vpop.permute.xlu0 %52
    %55 = vset.pattern.permute.xlu0 1
    %56 = vperm.xlu0 %55, %v17
    %v57 = vpop.permute.xlu0 %56
    %59 = vset.pattern.permute.xlu0 1
    %60 = vperm.xlu0 %59, %v18
    %v61 = vpop.permute.xlu0 %60
    %63 = vset.pattern.permute.xlu0 1
    %64 = vperm.xlu0 %63, %v19
    %v65 = vpop.permute.xlu0 %64
    %v67 = vadd.f32 %v47, %v53
    %v68 = vadd.f32 %v48, %v57
    %v69 = vadd.f32 %v49, %v61
    %v70 = vadd.f32 %v50, %v65
    %vm71 = vcmp.gt.f32.partialorder %v67, 0.0
    %vm72 = vcmp.gt.f32.partialorder %v68, 0.0
    %vm73 = vcmp.gt.f32.partialorder %v69, 0.0
    %vm74 = vcmp.gt.f32.partialorder %v70, 0.0
    %v75 = vmul.f32 %v67, 0.01
    %v76 = vmul.f32 %v68, 0.01
    %v77 = vmul.f32 %v69, 0.01
    %v78 = vmul.f32 %v70, 0.01
    %v79 = vsel %vm71, %v67, %v75
    %v80 = vsel %vm72, %v68, %v76
    %v81 = vsel %vm73, %v69, %v77
    %v82 = vsel %vm74, %v70, %v78
    %v83 = vld [vmem:[%s2] sm:$0xff]
    %v84 = vld [vmem:[%s2 + $0x8] sm:$0xff]
    %v85 = vld [vmem:[%s2 + $0x10] sm:$0xff]
    %v86 = vld [vmem:[%s2 + $0x18] sm:$0xff]
    %v87 = vpack.c.bf16 %v84, %v83
    %v88 = vpack.c.bf16 %v86, %v85
    %v89 = vpack.c.bf16 %v80, %v79
    %v90 = vpack.c.bf16 %v82, %v81
    %91 = vset.pattern.permute.xlu0 2
    %92 = vperm.xlu0 %91, %v16
    %v93 = vpop.permute.xlu0 %92
    %95 = vset.pattern.permute.xlu0 2
    %96 = vperm.xlu0 %95, %v17
    %v97 = vpop.permute.xlu0 %96
    %99 = vset.pattern.permute.xlu0 2
    %100 = vperm.xlu0 %99, %v18
    %v101 = vpop.permute.xlu0 %100
    %103 = vset.pattern.permute.xlu0 2
    %104 = vperm.xlu0 %103, %v19
    %v105 = vpop.permute.xlu0 %104
    %vm107 = vcmask 261120
    %v109 = vsel %vm107, %v87, 0
    %v112 = vsel %vm107, %v88, 0
    %114 = vmatprep.subr.bf16.mxu0 0
    %115 = vmatpush1.bf16.msra.mxu0 %v89
    %116 = vmatprep.subr.bf16.mxu0 0
    %117 = vmatpush1.bf16.msra.mxu0 %v90
    %118 = vmatprep.subr.bf16.mxu0 0
    %119 = vmatpush1.bf16.msra.mxu0 0
    %120 = vmatprep.subr.bf16.mxu0 0
    %121 = vmatpush1.bf16.msra.mxu0 0
    %122 = vmatprep.subr.bf16.mxu0 0
    %123 = vmatpush1.bf16.msra.mxu0 0
    %124 = vmatprep.subr.bf16.mxu0 0
    %125 = vmatpush1.bf16.msra.mxu0 0
    %126 = vmatprep.subr.bf16.mxu0 0
    %127 = vmatpush1.bf16.msra.mxu0 0
    %128 = vmatprep.subr.bf16.mxu0 0
    %129 = vmatpush1.bf16.msra.mxu0 0
    %130 = vmatprep.subr.bf16.mxu0 0
    %131 = vmatpush1.bf16.msra.mxu0 0
    %132 = vmatprep.subr.bf16.mxu0 0
    %133 = vmatpush1.bf16.msra.mxu0 0
    %134 = vmatprep.subr.bf16.mxu0 0
    %135 = vmatpush1.bf16.msra.mxu0 0
    %136 = vmatprep.subr.bf16.mxu0 0
    %137 = vmatpush1.bf16.msra.mxu0 0
    %138 = vmatprep.subr.bf16.mxu0 0
    %139 = vmatpush1.bf16.msra.mxu0 0
    %140 = vmatprep.subr.bf16.mxu0 0
    %141 = vmatpush1.bf16.msra.mxu0 0
    %142 = vmatprep.subr.bf16.mxu0 0
    %143 = vmatpush1.bf16.msra.mxu0 0
    %144 = vmatprep.subr.bf16.mxu0 0
    %145 = vmatpush1.bf16.msra.mxu0 0
    %146 = vmatprep.mubr.bf16.mxu0 0
    %147 = vmatmul.mubr.bf16.gmra.mrb[0].mxu0 %v109
    %v148 = vpop.f32.mrb[0].mxu0
    %v149 = vadd.f32 %v93, %v148
    %v150 = vpop.f32.mrb[0].mxu0
    %v151 = vpop.f32.mrb[0].mxu0
    %v152 = vadd.f32 %v97, %v151
    %v153 = vpop.f32.mrb[0].mxu0
    %154 = vmatprep.mubr.bf16.mxu0 0
    %155 = vmatmul.mubr.bf16.gmra.mrb[0].mxu0 %v112
    %v156 = vpop.f32.mrb[0].mxu0
    %v157 = vadd.f32 %v101, %v156
    %v158 = vpop.f32.mrb[0].mxu0
    %v159 = vpop.f32.mrb[0].mxu0
    %v160 = vadd.f32 %v105, %v159
    %v161 = vpop.f32.mrb[0].mxu0
    %162 = vdwg.mxu0
    %v163 = vlaneseq
    %v164 = vand.u32 %v163, 127
    %s165 = smul.u32 0, 128
    %v166 = vstv %s165
    %v167 = vadd.s32 %v164, %v166
    %vm168 = vcmp.lt.s32.totalorder %v167, 128
    %v169 = vsel %vm168, 1, 0
    %v170 = vcvt.s32.f32 %v169
    %v171 = vmul.f32 %v149, %v170
    %v172 = vmul.f32 %v152, %v170
    %v173 = vmul.f32 %v157, %v170
    %v174 = vmul.f32 %v160, %v170
    %v175 = vadd.f32 %v171, 0.0
    %v176 = vadd.f32 %v172, 0.0
    %v177 = vadd.f32 %v173, 0.0
    %v178 = vadd.f32 %v174, 0.0
    %v179 = vmul.f32 %v171, %v149
    %v180 = vmul.f32 %v172, %v152
    %v181 = vmul.f32 %v173, %v157
    %v182 = vmul.f32 %v174, %v160
    %v183 = vadd.f32 %v179, 0.0
    %v184 = vadd.f32 %v180, 0.0
    %v185 = vadd.f32 %v181, 0.0
    %v186 = vadd.f32 %v182, 0.0
    %187 = vst [vmem:[#allocation2] sm:$0xff] %v175
    %188 = vst [vmem:[#allocation2 + $0x8] sm:$0xff] %v176
    %189 = vst [vmem:[#allocation2 + $0x10] sm:$0xff] %v177
    %190 = vst [vmem:[#allocation2 + $0x18] sm:$0xff] %v178
    %191 = vst [vmem:[#allocation2 + $0x20] sm:$0xff] %v183
    %192 = vst [vmem:[#allocation2 + $0x28] sm:$0xff] %v184
    %193 = vst [vmem:[#allocation2 + $0x30] sm:$0xff] %v185
    %194 = vst [vmem:[#allocation2 + $0x38] sm:$0xff] %v186
    // Predicated region
    $region14: #{tpu_custom_call.1} parent=1 // pred_check
      _
    $region15: #{tpu_custom_call.1} parent=1 // pred_check_branch
      %196 = sbr.rel (0) target = $region17
    $region16: #{tpu_custom_call.1} parent=1 // pred_region
      %s198 = ssub.s32 1024, 1024
      %199 = vsyncadd [#allocation3], %s198
      %s200 = sshll.u32 [#allocation2], 4
      %s201 = int_to_ptr.vmem [resolvable:$true] %s200
      %206 = dma.vmem_to_hbm [thread:$0]  %s201, 1024, %s3, [#allocation3], 128, 128, 8
    $region17: #{tpu_custom_call.1} parent=1 // pred_fallthru
      _
    // Predicated region
    $region18: #{tpu_custom_call.1} parent=1 // pred_check
      _
    $region19: #{tpu_custom_call.1} parent=1 // pred_check_branch
      %208 = sbr.rel (0) target = $region21
    $region20: #{tpu_custom_call.1} parent=1 // pred_region
      %209 = dma.done [#allocation3], 1024
    $region21: #{tpu_custom_call.1} parent=1 // pred_fallthru
      _
    %210 = vsyncpa [#allocation3], 1

</llo_original>
